<compile_context>
chip_gen: v7x
topology: tpu7x:2x2x1
jax: 0.10.0
libtpu: 0.0.40
codegen_flags: <defaults>
</compile_context>

<pallas_src>
import functools

import jax
import jax.numpy as jnp
from jax import lax
from jax.experimental import pallas as pl
from jax.experimental.pallas import tpu as pltpu

BN_EPS = 1e-5
_LANE = 128
_VMEM_LIMIT = 48 * 1024 * 1024   # fits v7x's 64 MiB physical VMEM with headroom
_TILE_BUDGET = 24 * 1024 * 1024  # bytes for the double-buffered pipelined tiles
_TS_MAX = 65536                  # cap on lanes per grid step


def _pick_ts(hw, bytes_per_lane):
    """Largest lane-aligned spatial tile that fits the pipelined-tile budget."""
    if hw <= _LANE:
        return hw                                   # single full-extent tile
    ts = _TILE_BUDGET // (2 * bytes_per_lane)       # 2 pipeline buffers
    ts = max(_LANE, (ts // _LANE) * _LANE)
    ts = min(ts, _TS_MAX)
    hw_ceil = ((hw + _LANE - 1) // _LANE) * _LANE   # cover full spatial extent
    return min(ts, hw_ceil)


def _stats_kernel(x_ref, g_ref, s_ref, *, hw, ts, needs_mask):
    """Accumulate per-image channel sums and Gram matrix over spatial tiles."""
    t = pl.program_id(1)

    @pl.when(t == 0)
    def _init():
        g_ref[...] = jnp.zeros_like(g_ref)
        s_ref[...] = jnp.zeros_like(s_ref)

    x = x_ref[0]                                    # (Cin, TS) f32, lane-dense
    if needs_mask:                                  # static: only if HW ragged
        lane = lax.broadcasted_iota(jnp.int32, x.shape, 1)
        x = jnp.where(t * ts + lane < hw, x, 0.0)

    # Gram over the spatial axis: big axis sits on MXU K, no (Cout, TS) work.
    g_ref[0] += lax.dot_general(x, x, (((1,), (1,)), ((), ())),
                                preferred_element_type=jnp.float32)
    s_ref[0] += jnp.sum(x, axis=1, keepdims=True)


def _apply_kernel(x_ref, w_ref, b_ref, o_ref):
    """out = (scale-folded W) @ x + shift, lane-dense store."""
    y = jnp.dot(w_ref[...], x_ref[0], preferred_element_type=jnp.float32)
    o_ref[0] = (y + b_ref[...]).astype(o_ref.dtype)


@jax.jit
def linear_block(x_nchw, conv_w, bn_gamma, bn_beta):
    """Conv2d(1x1, bias=False) + BatchNorm2d with training-mode batch stats.

    x_nchw : (N, Cin, H, W)    float32
    conv_w : (Cout, Cin, 1, 1) float32  (PyTorch Conv2d weight layout)
    bn_gamma, bn_beta : (Cout,) float32
    returns: (N, Cout, H, W)   float32
    """
    N, Cin, H, W = x_nchw.shape
    Cout = conv_w.shape[0]
    HW = H * W
    M = N * HW
    inv_m = 1.0 / float(M)

    x3 = x_nchw.reshape(N, Cin, HW)          # free reshape, spatial on lanes
    w2 = conv_w.reshape(Cout, Cin)

    # ---------------- pass 1: per-image channel sums + Gram -----------------
    ts1 = _pick_ts(HW, 4 * Cin)
    nt1 = pl.cdiv(HW, ts1)
    g_part, s_part = pl.pallas_call(
        functools.partial(_stats_kernel, hw=HW, ts=ts1,
                          needs_mask=(HW % ts1 != 0)),
        out_shape=(jax.ShapeDtypeStruct((N, Cin, Cin), jnp.float32),
                   jax.ShapeDtypeStruct((N, Cin, 1), jnp.float32)),
        grid_spec=pltpu.PrefetchScalarGridSpec(
            num_scalar_prefetch=0,
            grid=(N, nt1),
            in_specs=[pl.BlockSpec((1, Cin, ts1), lambda n, t: (n, 0, t))],
            out_specs=(pl.BlockSpec((1, Cin, Cin), lambda n, t: (n, 0, 0)),
                       pl.BlockSpec((1, Cin, 1), lambda n, t: (n, 0, 0))),
        ),
        compiler_params=pltpu.CompilerParams(
            # n -> independent per-image partials (shards across v7x cores);
            # t -> reduction into the per-n output block, stays sequential.
            dimension_semantics=("parallel", "arbitrary"),
            vmem_limit_bytes=_VMEM_LIMIT,
        ),
        cost_estimate=pl.CostEstimate(
            flops=int(2 * M * Cin * Cin + M * Cin),
            transcendentals=0,
            bytes_accessed=int(4 * (N * Cin * HW + N * Cin * (Cin + 1))),
        ),
    )(x3)

    # ---------------- tiny BN fold (plain XLA, O(Cin*Cout)) -----------------
    G = jnp.sum(g_part, axis=0)                      # (Cin, Cin), tree-reduced
    s = jnp.sum(s_part, axis=0)[:, 0]                # (Cin,)
    mean = (w2 @ s) * inv_m                          # (Cout,)
    ey2 = jnp.sum((w2 @ G) * w2, axis=1) * inv_m     # (Cout,)  E[y^2]
    var = jnp.maximum(ey2 - mean * mean, 0.0)
    inv_std = lax.rsqrt(var + BN_EPS)
    scale = bn_gamma * inv_std
    shift = (bn_beta - mean * scale).reshape(Cout, 1)
    w_folded = w2 * scale[:, None]                   # fold BN scale into W

    # ---------------- pass 2: out = W' @ x + shift --------------------------
    ts2 = _pick_ts(HW, 4 * (Cin + Cout))
    nt2 = pl.cdiv(HW, ts2)
    out3 = pl.pallas_call(
        _apply_kernel,
        out_shape=jax.ShapeDtypeStruct((N, Cout, HW), jnp.float32),
        grid_spec=pltpu.PrefetchScalarGridSpec(
            num_scalar_prefetch=0,
            grid=(N, nt2),
            in_specs=[
                pl.BlockSpec((1, Cin, ts2), lambda n, t: (n, 0, t)),
                pl.BlockSpec((Cout, Cin), lambda n, t: (0, 0)),   # resident
                pl.BlockSpec((Cout, 1), lambda n, t: (0, 0)),     # resident
            ],
            out_specs=pl.BlockSpec((1, Cout, ts2), lambda n, t: (n, 0, t)),
        ),
        compiler_params=pltpu.CompilerParams(
            dimension_semantics=("parallel", "parallel"),
            vmem_limit_bytes=_VMEM_LIMIT,
        ),
        cost_estimate=pl.CostEstimate(
            flops=int(2 * M * Cin * Cout + M * Cout),
            transcendentals=0,
            bytes_accessed=int(4 * (N * (Cin + Cout) * HW + Cout * (Cin + 1))),
        ),
    )(x3, w_folded, shift)

    # (N, Cout, HW) -> (N, Cout, H, W): free reshape, output already NCHW.
    return out3.reshape(N, Cout, H, W)


def _reference(x_nchw, conv_w, bn_gamma, bn_beta):
    """Pure-JAX reference (Conv2d 1x1 no bias + training-mode BatchNorm2d)."""
    N, Cin, H, W = x_nchw.shape
    Cout = conv_w.shape[0]
    w2d = conv_w.reshape(Cout, Cin)
    y = jnp.einsum('nchw,oc->nohw', x_nchw, w2d)
    mean = jnp.mean(y, axis=(0, 2, 3), keepdims=True)
    var = jnp.mean((y - mean) ** 2, axis=(0, 2, 3), keepdims=True)
    g = bn_gamma.reshape(1, Cout, 1, 1)
    b = bn_beta.reshape(1, Cout, 1, 1)
    return (y - mean) * lax.rsqrt(var + BN_EPS) * g + b


# TODO(synk): BatchNorm2d running_mean/running_var buffer updates (training-time
# state side effect) are not modeled; only the returned tensor is computed.

if __name__ == "__main__":
    # Small shapes consistent with the module: N=2, in_c=4, out_c=8, 16x16 spatial.
    N, Cin, Cout, H, W = 2, 4, 8, 16, 16

    key = jax.random.PRNGKey(0)
    kx, kw, kg, kb = jax.random.split(key, 4)

    x = jax.random.normal(kx, (N, Cin, H, W), dtype=jnp.float32)
    conv_w = jax.random.normal(kw, (Cout, Cin, 1, 1), dtype=jnp.float32) * 0.1
    bn_gamma = 1.0 + 0.1 * jax.random.normal(kg, (Cout,), dtype=jnp.float32)
    bn_beta = 0.1 * jax.random.normal(kb, (Cout,), dtype=jnp.float32)

    out = jax.block_until_ready(linear_block(x, conv_w, bn_gamma, bn_beta))

    ref = _reference(x, conv_w, bn_gamma, bn_beta)
    assert out.shape == (N, Cout, H, W)
    assert jnp.allclose(out, ref, atol=1e-4, rtol=1e-4), (
        "max abs err = %f" % float(jnp.max(jnp.abs(out - ref))))

    print("KERNEL_OK")
</pallas_src>

<mosaic_0001>
module attributes {stable_mosaic.version = 11 : i64} {
  func.func @_stats_kernel(%arg0: i32, %arg1: i32, %arg2: memref<1x4x256xf32, #tpu.memory_space<vmem>>, %arg3: memref<1x4x4xf32, #tpu.memory_space<vmem>>, %arg4: memref<1x4x1xf32, #tpu.memory_space<vmem>>) attributes {dimension_semantics = [#tpu.dimension_semantics<parallel>, #tpu.dimension_semantics<arbitrary>], iteration_bounds = array<i64: 2, 1>, scalar_prefetch = 0 : i64, scratch_operands = 0 : i64, tpu.core_type = #tpu.core_type<tc>, window_params = [{transform_indices = @transform_0, window_bounds = array<i64: 1, 4, 256>}, {transform_indices = @transform_1, window_bounds = array<i64: 1, 4, 4>}, {transform_indices = @transform_2, window_bounds = array<i64: 1, 4, 1>}]} {
    %c0_i32 = arith.constant 0 : i32
    %0 = arith.cmpi eq, %arg1, %c0_i32 : i32
    %1 = arith.extui %0 : i1 to i32
    %c0_i32_0 = arith.constant 0 : i32
    %2 = arith.cmpi ne, %1, %c0_i32_0 : i32
    scf.if %2 {
      %cst_16 = arith.constant 0.000000e+00 : f32
      %20 = vector.broadcast %cst_16 : f32 to vector<1x4x4xf32>
      %c0_17 = arith.constant 0 : index
      %c0_18 = arith.constant 0 : index
      %c0_19 = arith.constant 0 : index
      %21 = vector.load %arg3[%c0_17, %c0_18, %c0_19] : memref<1x4x4xf32, #tpu.memory_space<vmem>>, vector<1x4x4xf32>
      tpu.vector_store %arg3[%c0_17, %c0_18, %c0_19], %20 {strides = array<i32>} : memref<1x4x4xf32, #tpu.memory_space<vmem>>, vector<1x4x4xf32>,
      %cst_20 = arith.constant 0.000000e+00 : f32
      %22 = vector.broadcast %cst_20 : f32 to vector<1x4x1xf32>
      %c0_21 = arith.constant 0 : index
      %c0_22 = arith.constant 0 : index
      %c0_23 = arith.constant 0 : index
      %23 = vector.load %arg4[%c0_21, %c0_22, %c0_23] : memref<1x4x1xf32, #tpu.memory_space<vmem>>, vector<1x4x1xf32>
      tpu.vector_store %arg4[%c0_21, %c0_22, %c0_23], %22 {strides = array<i32>} : memref<1x4x1xf32, #tpu.memory_space<vmem>>, vector<1x4x1xf32>,
    } else {
    }
    %c0 = arith.constant 0 : index
    %c0_1 = arith.constant 0 : index
    %c0_2 = arith.constant 0 : index
    %3 = vector.load %arg2[%c0, %c0_1, %c0_2] : memref<1x4x256xf32, #tpu.memory_space<vmem>>, vector<1x4x256xf32>
    %4 = vector.shape_cast %3 : vector<1x4x256xf32> to vector<4x256xf32>
    %c0_3 = arith.constant 0 : index
    %c0_4 = arith.constant 0 : index
    %c0_5 = arith.constant 0 : index
    %5 = vector.load %arg3[%c0_3, %c0_4, %c0_5] : memref<1x4x4xf32, #tpu.memory_space<vmem>>, vector<1x4x4xf32>
    %6 = vector.shape_cast %5 : vector<1x4x4xf32> to vector<4x4xf32>
    %cst = arith.constant dense<0.000000e+00> : vector<4x4xf32>
    %7 = tpu.matmul %4, %4, %cst {dimension_numbers = #tpu.dot_dimension_numbers<[1], [1], [0], [0], [0, 0, 1, 0], [], []>} : vector<4x256xf32>, vector<4x256xf32>, vector<4x4xf32> -> vector<4x4xf32>
    %8 = arith.addf %6, %7 : vector<4x4xf32>
    %c0_6 = arith.constant 0 : index
    %c0_7 = arith.constant 0 : index
    %c0_8 = arith.constant 0 : index
    %9 = vector.load %arg3[%c0_6, %c0_7, %c0_8] : memref<1x4x4xf32, #tpu.memory_space<vmem>>, vector<1x4x4xf32>
    %10 = vector.shape_cast %9 : vector<1x4x4xf32> to vector<4x4xf32>
    %11 = vector.shape_cast %8 : vector<4x4xf32> to vector<1x4x4xf32>
    tpu.vector_store %arg3[%c0_6, %c0_7, %c0_8], %11 {strides = array<i32>} : memref<1x4x4xf32, #tpu.memory_space<vmem>>, vector<1x4x4xf32>,
    %c0_9 = arith.constant 0 : index
    %c0_10 = arith.constant 0 : index
    %c0_11 = arith.constant 0 : index
    %12 = vector.load %arg4[%c0_9, %c0_10, %c0_11] : memref<1x4x1xf32, #tpu.memory_space<vmem>>, vector<1x4x1xf32>
    %13 = vector.shape_cast %12 : vector<1x4x1xf32> to vector<4x1xf32>
    %cst_12 = arith.constant dense<0.000000e+00> : vector<4xf32>
    %14 = vector.multi_reduction <add>, %4, %cst_12 [1] : vector<4x256xf32> to vector<4xf32>
    %15 = vector.shape_cast %14 : vector<4xf32> to vector<4x1xf32>
    %16 = arith.addf %13, %15 : vector<4x1xf32>
    %c0_13 = arith.constant 0 : index
    %c0_14 = arith.constant 0 : index
    %c0_15 = arith.constant 0 : index
    %17 = vector.load %arg4[%c0_13, %c0_14, %c0_15] : memref<1x4x1xf32, #tpu.memory_space<vmem>>, vector<1x4x1xf32>
    %18 = vector.shape_cast %17 : vector<1x4x1xf32> to vector<4x1xf32>
    %19 = vector.shape_cast %16 : vector<4x1xf32> to vector<1x4x1xf32>
    tpu.vector_store %arg4[%c0_13, %c0_14, %c0_15], %19 {strides = array<i32>} : memref<1x4x1xf32, #tpu.memory_space<vmem>>, vector<1x4x1xf32>,
    return
  }
  func.func @transform_0(%arg0: i32, %arg1: i32) -> (i32, i32, i32) {
    %c0_i32 = arith.constant 0 : i32
    %c0_i32_0 = arith.constant 0 : i32
    return %arg0, %c0_i32, %arg1 : i32, i32, i32
  }
  func.func @transform_1(%arg0: i32, %arg1: i32) -> (i32, i32, i32) {
    %c0_i32 = arith.constant 0 : i32
    %c0_i32_0 = arith.constant 0 : i32
    %c0_i32_1 = arith.constant 0 : i32
    return %arg0, %c0_i32, %c0_i32_0 : i32, i32, i32
  }
  func.func @transform_2(%arg0: i32, %arg1: i32) -> (i32, i32, i32) {
    %c0_i32 = arith.constant 0 : i32
    %c0_i32_0 = arith.constant 0 : i32
    %c0_i32_1 = arith.constant 0 : i32
    return %arg0, %c0_i32, %c0_i32_0 : i32, i32, i32
  }
}

module attributes {stable_mosaic.version = 11 : i64} {
  func.func @_apply_kernel(%arg0: i32, %arg1: i32, %arg2: memref<1x4x256xf32, #tpu.memory_space<vmem>>, %arg3: memref<8x4xf32, #tpu.memory_space<vmem>>, %arg4: memref<8x1xf32, #tpu.memory_space<vmem>>, %arg5: memref<1x8x256xf32, #tpu.memory_space<vmem>>) attributes {dimension_semantics = [#tpu.dimension_semantics<parallel>, #tpu.dimension_semantics<parallel>], iteration_bounds = array<i64: 2, 1>, scalar_prefetch = 0 : i64, scratch_operands = 0 : i64, tpu.core_type = #tpu.core_type<tc>, window_params = [{transform_indices = @transform_0, window_bounds = array<i64: 1, 4, 256>}, {pipeline_mode = #tpu.pipeline_mode<synchronous>, transform_indices = @transform_1, window_bounds = array<i64: 8, 4>}, {pipeline_mode = #tpu.pipeline_mode<synchronous>, transform_indices = @transform_2, window_bounds = array<i64: 8, 1>}, {transform_indices = @transform_3, window_bounds = array<i64: 1, 8, 256>}]} {
    %c0 = arith.constant 0 : index
    %c0_0 = arith.constant 0 : index
    %0 = vector.load %arg3[%c0, %c0_0] : memref<8x4xf32, #tpu.memory_space<vmem>>, vector<8x4xf32>
    %c0_1 = arith.constant 0 : index
    %c0_2 = arith.constant 0 : index
    %c0_3 = arith.constant 0 : index
    %1 = vector.load %arg2[%c0_1, %c0_2, %c0_3] : memref<1x4x256xf32, #tpu.memory_space<vmem>>, vector<1x4x256xf32>
    %2 = vector.shape_cast %1 : vector<1x4x256xf32> to vector<4x256xf32>
    %cst = arith.constant dense<0.000000e+00> : vector<8x256xf32>
    %3 = tpu.matmul %0, %2, %cst {dimension_numbers = #tpu.dot_dimension_numbers<[1], [0], [0], [1], [0, 0, 1, 1], [], []>} : vector<8x4xf32>, vector<4x256xf32>, vector<8x256xf32> -> vector<8x256xf32>
    %c0_4 = arith.constant 0 : index
    %c0_5 = arith.constant 0 : index
    %4 = vector.load %arg4[%c0_4, %c0_5] : memref<8x1xf32, #tpu.memory_space<vmem>>, vector<8x1xf32>
    %5 = vector.broadcast %4 : vector<8x1xf32> to vector<8x256xf32>
    %6 = arith.addf %3, %5 : vector<8x256xf32>
    %c0_6 = arith.constant 0 : index
    %c0_7 = arith.constant 0 : index
    %c0_8 = arith.constant 0 : index
    %7 = vector.load %arg5[%c0_6, %c0_7, %c0_8] : memref<1x8x256xf32, #tpu.memory_space<vmem>>, vector<1x8x256xf32>
    %8 = vector.shape_cast %7 : vector<1x8x256xf32> to vector<8x256xf32>
    %9 = vector.shape_cast %6 : vector<8x256xf32> to vector<1x8x256xf32>
    tpu.vector_store %arg5[%c0_6, %c0_7, %c0_8], %9 {strides = array<i32>} : memref<1x8x256xf32, #tpu.memory_space<vmem>>, vector<1x8x256xf32>,
    return
  }
  func.func @transform_0(%arg0: i32, %arg1: i32) -> (i32, i32, i32) {
    %c0_i32 = arith.constant 0 : i32
    %c0_i32_0 = arith.constant 0 : i32
    return %arg0, %c0_i32, %arg1 : i32, i32, i32
  }
  func.func @transform_1(%arg0: i32, %arg1: i32) -> (i32, i32) {
    %c0_i32 = arith.constant 0 : i32
    %c0_i32_0 = arith.constant 0 : i32
    %c0_i32_1 = arith.constant 0 : i32
    return %c0_i32, %c0_i32_0 : i32, i32
  }
  func.func @transform_2(%arg0: i32, %arg1: i32) -> (i32, i32) {
    %c0_i32 = arith.constant 0 : i32
    %c0_i32_0 = arith.constant 0 : i32
    %c0_i32_1 = arith.constant 0 : i32
    return %c0_i32, %c0_i32_0 : i32, i32
  }
  func.func @transform_3(%arg0: i32, %arg1: i32) -> (i32, i32, i32) {
    %c0_i32 = arith.constant 0 : i32
    %c0_i32_0 = arith.constant 0 : i32
    return %arg0, %c0_i32, %arg1 : i32, i32, i32
  }
}

</mosaic_0001>

<llo_original>
// kernel: linear_block.3
$region0: #{linear_block.3}
  #allocation0 [shape = 'u32[]', space=smem, size = 0x4, offset = 0x4, fixed_abs, tag = 'smem constant byte address 0x4 - core index']
  #allocation1 [shape = 'u32[144,128]{1,0:T(1,128)}', space=vmem, size = 0x12000, scoped, tag = 'internal scratch']
  %s0 = inlined_call_operand.vmem [shape: f32[2,4,256], index: 0, kind: input, shape index: {}]
  %s1 = inlined_call_operand.vmem [shape: f32[8,4], index: 1, kind: input, shape index: {}]
  %s2 = inlined_call_operand.vmem [shape: f32[8,1], index: 2, kind: input, shape index: {}]
  %s3 = inlined_call_operand.vmem [shape: f32[2,8,256], index: 3, kind: output, shape index: {}]
  %s4 = sld [smem:[#allocation0]]
  $region45: #{linear_block.3} parent=0
    _
  %s6 = ssub.s32 1, %s4
  %s7 = scalar_select 0, %s6, %s4
  loop: start=0, step=1, limit=4
  $region2: #{linear_block.3} parent=0 // loop_pre_header
    _
  $region3: #{linear_block.3} parent=0 // loop_header
    %s9 = sphi 0, %s13
    %p10 = scmp.ge.s32.totalorder %s9, 4
    %s16 = sphi 0, %s28
    %s17 = sphi 0, %s24
    %s18 = sphi 0, %s16
    %s19 = sphi 0, %s17
    %s20 = sphi 0, %s18
    %s21 = sphi 0, %s19
    %s33 = sphi 0, %s35
    %s36 = sphi 0, %s33
    %s37 = sphi 0, %s36
    %s53 = sphi 0, %s37
    %s57 = sphi 0, %s57
    %s59 = sphi 0, %s57
    %s60 = sphi 0, %s59
    %s74 = sphi 0, %s60
    %s78 = sphi 0, %s78
    %s80 = sphi 0, %s78
    %s81 = sphi 0, %s80
    %s95 = sphi 0, %s81
    %s103 = sphi 0, %s105
    %s106 = sphi 0, %s103
    %s107 = sphi 0, %s106
    %s123 = sphi 0, %s107
  $region4: #{linear_block.3} parent=0 // loop_header_branch
    %12 = sbr.rel (%p10) target = $region8
  $region5: #{linear_block.3} parent=0 // loop_body
    %s14 = ssub.s32 %s9, 1
    %s15 = ssub.s32 %s9, 2
    %s22 = sadd.s32 1, %s17
    %p23 = scmp.ge.s32.totalorder %s22, 1
    %s24 = scalar_select %p23, 0, %s22
    %s25 = sadd.s32 1, %s16
    %s26 = scalar_select %p23, %s25, %s16
    %p27 = scmp.ge.s32.totalorder %s26, 2
    %s28 = scalar_select %p27, 0, %s26
    %s29 = ssub.s32 %s16, %s28
    %s30 = ssub.s32 %s17, %s24
    %s31 = sor.u32 %s29, %s30
    %p32 = scmp.eq.s32.totalorder %s31, 0
    %s34 = sadd.s32 %s33, 1
    %s35 = scalar_select %p32, %s33, %s34
    %p38 = pneg %p32
    %p39 = scmp.eq.s32.totalorder %s9, 1
    %p40 = por %p38, %p39
    %p41 = scmp.ne.s32.totalorder %s33, %s36
    %p42 = scmp.eq.s32.totalorder %s9, 0
    %p43 = por %p41, %p42
    %p44 = scmp.ne.s32.totalorder %s33, %s36
    %p45 = scmp.eq.s32.totalorder %s14, 1
    %p46 = por %p44, %p45
    %p47 = scmp.ne.s32.totalorder %s36, %s37
    %p48 = scmp.eq.s32.totalorder %s14, 0
    %p49 = por %p47, %p48
    %p50 = scmp.ne.s32.totalorder %s36, %s37
    %p51 = scmp.eq.s32.totalorder %s15, 1
    %p52 = por %p50, %p51
    %p54 = scmp.ne.s32.totalorder %s37, %s53
    %p55 = scmp.eq.s32.totalorder %s15, 0
    %p56 = por %p54, %p55
    %s58 = sadd.s32 %s57, 1
    %p61 = scmp.eq.s32.totalorder %s9, 1
    %p62 = scmp.ne.s32.totalorder %s57, %s59
    %p63 = scmp.eq.s32.totalorder %s9, 0
    %p64 = por %p62, %p63
    %p65 = scmp.ne.s32.totalorder %s57, %s59
    %p66 = scmp.eq.s32.totalorder %s14, 1
    %p67 = por %p65, %p66
    %p68 = scmp.ne.s32.totalorder %s59, %s60
    %p69 = scmp.eq.s32.totalorder %s14, 0
    %p70 = por %p68, %p69
    %p71 = scmp.ne.s32.totalorder %s59, %s60
    %p72 = scmp.eq.s32.totalorder %s15, 1
    %p73 = por %p71, %p72
    %p75 = scmp.ne.s32.totalorder %s60, %s74
    %p76 = scmp.eq.s32.totalorder %s15, 0
    %p77 = por %p75, %p76
    %s79 = sadd.s32 %s78, 1
    %p82 = scmp.eq.s32.totalorder %s9, 1
    %p83 = scmp.ne.s32.totalorder %s78, %s80
    %p84 = scmp.eq.s32.totalorder %s9, 0
    %p85 = por %p83, %p84
    %p86 = scmp.ne.s32.totalorder %s78, %s80
    %p87 = scmp.eq.s32.totalorder %s14, 1
    %p88 = por %p86, %p87
    %p89 = scmp.ne.s32.totalorder %s80, %s81
    %p90 = scmp.eq.s32.totalorder %s14, 0
    %p91 = por %p89, %p90
    %p92 = scmp.ne.s32.totalorder %s80, %s81
    %p93 = scmp.eq.s32.totalorder %s15, 1
    %p94 = por %p92, %p93
    %p96 = scmp.ne.s32.totalorder %s81, %s95
    %p97 = scmp.eq.s32.totalorder %s15, 0
    %p98 = por %p96, %p97
    %s99 = ssub.s32 %s16, %s28
    %s100 = ssub.s32 %s17, %s24
    %s101 = sor.u32 %s99, %s100
    %p102 = scmp.eq.s32.totalorder %s101, 0
    %s104 = sadd.s32 %s103, 1
    %s105 = scalar_select %p102, %s103, %s104
    %p108 = pneg %p102
    %p109 = scmp.eq.s32.totalorder %s9, 1
    %p110 = por %p108, %p109
    %p111 = scmp.ne.s32.totalorder %s103, %s106
    %p112 = scmp.eq.s32.totalorder %s9, 0
    %p113 = por %p111, %p112
    %p114 = scmp.ne.s32.totalorder %s103, %s106
    %p115 = scmp.eq.s32.totalorder %s14, 1
    %p116 = por %p114, %p115
    %p117 = scmp.ne.s32.totalorder %s106, %s107
    %p118 = scmp.eq.s32.totalorder %s14, 0
    %p119 = por %p117, %p118
    %p120 = scmp.ne.s32.totalorder %s106, %s107
    %p121 = scmp.eq.s32.totalorder %s15, 1
    %p122 = por %p120, %p121
    %p124 = scmp.ne.s32.totalorder %s107, %s123
    %p125 = scmp.eq.s32.totalorder %s15, 0
    %p126 = por %p124, %p125
    %p127 = scmp.le.s32.totalorder 1, %s9
    %p128 = scmp.lt.s32.totalorder %s9, 3
    %p129 = pnand %p127, %p128
    %p130 = pneg %p129
    // Predicated region
    $region9: #{linear_block.3} parent=5 // pred_check
      _
    $region10: #{linear_block.3} parent=5 // pred_check_branch
      %132 = sbr.rel (%p129) target = $region12
    $region11: #{linear_block.3} parent=5 // pred_region
      %s133 = ssub.s32 %s9, 1
      // Predicated region
      $region13: #{linear_block.3} parent=11 // pred_check
        %p134 = pneg %p70
      $region14: #{linear_block.3} parent=11 // pred_check_branch
        %136 = sbr.rel (%p134) target = $region16
      $region15: #{linear_block.3} parent=11 // pred_region
        _
      $region16: #{linear_block.3} parent=11 // pred_fallthru
        _
      // Predicated region
      $region17: #{linear_block.3} parent=11 // pred_check
        %p137 = pneg %p91
      $region18: #{linear_block.3} parent=11 // pred_check_branch
        %139 = sbr.rel (%p137) target = $region20
      $region19: #{linear_block.3} parent=11 // pred_region
        _
      $region20: #{linear_block.3} parent=11 // pred_fallthru
        _
    $region12: #{linear_block.3} parent=5 // pred_fallthru
      _
    %p140 = scmp.lt.s32.totalorder %s9, 2
    // Predicated region
    $region21: #{linear_block.3} parent=5 // pred_check
      %p141 = pneg %p140
    $region22: #{linear_block.3} parent=5 // pred_check_branch
      %143 = sbr.rel (%p141) target = $region24
    $region23: #{linear_block.3} parent=5 // pred_region
      // Predicated region
      $region25: #{linear_block.3} parent=23 // pred_check
        %p144 = pneg %p43
      $region26: #{linear_block.3} parent=23 // pred_check_branch
        %146 = sbr.rel (%p144) target = $region28
      $region27: #{linear_block.3} parent=23 // pred_region
        %s147 = smul.u32 2, %s17
        %p148 = scmp.lt.s32.totalorder %s16, 1
        %s149 = scalar_select %p148, %s16, 1
        %p150 = scmp.lt.s32.totalorder %s147, 1
        %s151 = scalar_select %p150, %s147, 1
        %s152 = smul.addr %s149, 2
        %s153 = sadd.s32 %s151, %s152
        %s154 = smul.addr %s153, 4
        %s155 = scalar_lea.vmem %s0, %s154
        %s156 = smul.u32 2, %s17
      $region28: #{linear_block.3} parent=23 // pred_fallthru
        _
    $region24: #{linear_block.3} parent=5 // pred_fallthru
      _
    %p157 = scmp.le.s32.totalorder 1, %s9
    %p158 = scmp.lt.s32.totalorder %s9, 3
    %p159 = pnand %p157, %p158
    %p160 = pneg %p159
    // Predicated region
    $region29: #{linear_block.3} parent=5 // pred_check
      _
    $region30: #{linear_block.3} parent=5 // pred_check_branch
      %162 = sbr.rel (%p159) target = $region32
    $region31: #{linear_block.3} parent=5 // pred_region
      %s163 = ssub.s32 %s9, 1
      %s164 = smul.u32 2, %s19
      %p165 = scmp.lt.s32.totalorder %s18, 1
      %s166 = scalar_select %p165, %s18, 1
      %p167 = scmp.lt.s32.totalorder %s164, 1
      %s168 = scalar_select %p167, %s164, 1
      %s169 = smul.addr %s166, 2
      %s170 = sadd.s32 %s168, %s169
      %s171 = smul.addr %s170, 4
      %s172 = scalar_lea.vmem %s0, %s171
      %p173 = pneg %p49
      %p174 = pneg %p46
      %p175 = pneg %p70
      %p176 = pneg %p67
      %p177 = pneg %p91
      %p178 = pneg %p88
      %p179 = pneg %p119
      %p180 = pneg %p116
      %s181 = smul.u32 2, %s19
      %p182 = scmp.lt.s32.totalorder %s18, 1
      %s183 = scalar_select %p182, %s18, 1
      %p184 = scmp.lt.s32.totalorder %s181, 1
      %s185 = scalar_select %p184, %s181, 1
      %s186 = smul.addr %s183, 2
      %s187 = sadd.s32 %s185, %s186
      %s188 = smul.addr %s187, 8
      %s189 = scalar_lea.vmem %s3, %s188
      %s190 = smul.u32 2, %s19
      %p191 = scmp.lt.s32.totalorder %s18, 1
      %s192 = scalar_select %p191, %s18, 1
      %p193 = scmp.lt.s32.totalorder %s190, 1
      %s194 = scalar_select %p193, %s190, 1
      %s195 = smul.addr %s192, 2
      %s196 = sadd.s32 %s194, %s195
      %s197 = smul.addr %s196, 4
      %s198 = scalar_lea.vmem %s0, %s197
      %s199 = smul.u32 2, %s19
      %s200 = smul.u32 2, %s19
      %p201 = scmp.lt.s32.totalorder %s18, 1
      %s202 = scalar_select %p201, %s18, 1
      %p203 = scmp.lt.s32.totalorder %s200, 1
      %s204 = scalar_select %p203, %s200, 1
      %s205 = smul.addr %s202, 2
      %s206 = sadd.s32 %s204, %s205
      %s207 = smul.addr %s206, 8
      %s208 = scalar_lea.vmem %s3, %s207
      %s209 = smul.u32 2, %s19
      %v210 = vld [vmem:[%s1] sm:$0xff]
      %v211 = vld [vmem:[%s198] sm:$0xff]
      %v212 = vld [vmem:[%s2] sm:$0xff]
      %214 = vset.pattern.permute.xlu0 0
      %215 = vperm.xlu0 %214, %v212
      %v216 = vpop.permute.xlu0 %215
      %v219 = vcombine.high %v211, %v211
      %vm220 = vcmask 31744
      %v222 = vsel %vm220, %v210, 0
      %vm224 = vcmask 1043456
      %v225 = vsel %vm224, %v211, 0
      %v227 = vsel %vm224, %v219, 0
      %229 = vmatprep.subr.mxu0 %v227
      %230 = vmatpush1.msra.mxu0 %v225
      %231 = vmatprep.subr.mxu0 0.0
      %232 = vmatpush1.msra.mxu0 0.0
      %233 = vmatprep.subr.mxu0 0.0
      %234 = vmatpush1.msra.mxu0 0.0
      %235 = vmatprep.subr.mxu0 0.0
      %236 = vmatpush1.msra.mxu0 0.0
      %237 = vmatprep.subr.mxu0 0.0
      %238 = vmatpush1.msra.mxu0 0.0
      %239 = vmatprep.subr.mxu0 0.0
      %240 = vmatpush1.msra.mxu0 0.0
      %241 = vmatprep.subr.mxu0 0.0
      %242 = vmatpush1.msra.mxu0 0.0
      %243 = vmatprep.subr.mxu0 0.0
      %244 = vmatpush1.msra.mxu0 0.0
      %245 = vmatprep.subr.mxu0 0.0
      %246 = vmatpush1.msra.mxu0 0.0
      %247 = vmatprep.subr.mxu0 0.0
      %248 = vmatpush1.msra.mxu0 0.0
      %249 = vmatprep.subr.mxu0 0.0
      %250 = vmatpush1.msra.mxu0 0.0
      %251 = vmatprep.subr.mxu0 0.0
      %252 = vmatpush1.msra.mxu0 0.0
      %253 = vmatprep.subr.mxu0 0.0
      %254 = vmatpush1.msra.mxu0 0.0
      %255 = vmatprep.subr.mxu0 0.0
      %256 = vmatpush1.msra.mxu0 0.0
      %257 = vmatprep.subr.mxu0 0.0
      %258 = vmatpush1.msra.mxu0 0.0
      %259 = vmatprep.subr.mxu0 0.0
      %260 = vmatpush1.msra.mxu0 0.0
      %261 = vmatprep.subr.mxu0 0.0
      %262 = vmatpush1.msra.mxu0 0.0
      %263 = vmatprep.subr.mxu0 0.0
      %264 = vmatpush1.msra.mxu0 0.0
      %265 = vmatprep.subr.mxu0 0.0
      %266 = vmatpush1.msra.mxu0 0.0
      %267 = vmatprep.subr.mxu0 0.0
      %268 = vmatpush1.msra.mxu0 0.0
      %269 = vmatprep.subr.mxu0 0.0
      %270 = vmatpush1.msra.mxu0 0.0
      %271 = vmatprep.subr.mxu0 0.0
      %272 = vmatpush1.msra.mxu0 0.0
      %273 = vmatprep.subr.mxu0 0.0
      %274 = vmatpush1.msra.mxu0 0.0
      %275 = vmatprep.subr.mxu0 0.0
      %276 = vmatpush1.msra.mxu0 0.0
      %277 = vmatprep.subr.mxu0 0.0
      %278 = vmatpush1.msra.mxu0 0.0
      %279 = vmatprep.subr.mxu0 0.0
      %280 = vmatpush1.msra.mxu0 0.0
      %281 = vmatprep.subr.mxu0 0.0
      %282 = vmatpush1.msra.mxu0 0.0
      %283 = vmatprep.subr.mxu0 0.0
      %284 = vmatpush1.msra.mxu0 0.0
      %285 = vmatprep.subr.mxu0 0.0
      %286 = vmatpush1.msra.mxu0 0.0
      %287 = vmatprep.subr.mxu0 0.0
      %288 = vmatpush1.msra.mxu0 0.0
      %289 = vmatprep.subr.mxu0 0.0
      %290 = vmatpush1.msra.mxu0 0.0
      %291 = vmatprep.subr.mxu0 0.0
      %292 = vmatpush1.msra.mxu0 0.0
      %293 = vmatprep.mubr.f32.mxu0 0.0
      %294 = vmatmul.mubr.f32.gmra.mrb[0].mxu0 %v222
      %v295 = vpop.f32.mrb[0].mxu0
      %v296 = vadd.f32 %v216, %v295
      %v297 = vpop.f32.mrb[0].mxu0
      %v298 = vadd.f32 %v216, %v297
      %299 = vdwg.mxu0
      %300 = vst [vmem:[%s208] sm:$0xff] %v296
      %301 = vst [vmem:[%s208 + $0x8] sm:$0xff] %v298
      %s302 = smul.u32 2, %s19
      %p303 = scmp.lt.s32.totalorder %s18, 1
      %s304 = scalar_select %p303, %s18, 1
      %p305 = scmp.lt.s32.totalorder %s302, 1
      %s306 = scalar_select %p305, %s302, 1
      %s307 = smul.addr %s304, 2
      %s308 = sadd.s32 %s306, %s307
      %s309 = smul.addr %s308, 8
      %s310 = scalar_lea.vmem %s3, %s309
      // Predicated region
      $region33: #{linear_block.3} parent=31 // pred_check
        %p311 = pneg %p116
      $region34: #{linear_block.3} parent=31 // pred_check_branch
        %313 = sbr.rel (%p311) target = $region36
      $region35: #{linear_block.3} parent=31 // pred_region
        %s314 = smul.u32 2, %s19
      $region36: #{linear_block.3} parent=31 // pred_fallthru
        _
    $region32: #{linear_block.3} parent=5 // pred_fallthru
      _
    %p315 = scmp.le.s32.totalorder 2, %s9
    // Predicated region
    $region37: #{linear_block.3} parent=5 // pred_check
      %p316 = pneg %p315
    $region38: #{linear_block.3} parent=5 // pred_check_branch
      %318 = sbr.rel (%p316) target = $region40
    $region39: #{linear_block.3} parent=5 // pred_region
      %s319 = ssub.s32 %s9, 2
      // Predicated region
      $region41: #{linear_block.3} parent=39 // pred_check
        %p320 = pneg %p122
      $region42: #{linear_block.3} parent=39 // pred_check_branch
        %322 = sbr.rel (%p320) target = $region44
      $region43: #{linear_block.3} parent=39 // pred_region
        %s323 = smul.u32 2, %s21
        %p324 = scmp.lt.s32.totalorder %s20, 1
        %s325 = scalar_select %p324, %s20, 1
        %p326 = scmp.lt.s32.totalorder %s323, 1
        %s327 = scalar_select %p326, %s323, 1
        %s328 = smul.addr %s325, 2
        %s329 = sadd.s32 %s327, %s328
        %s330 = smul.addr %s329, 8
        %s331 = scalar_lea.vmem %s3, %s330
      $region44: #{linear_block.3} parent=39 // pred_fallthru
        _
    $region40: #{linear_block.3} parent=5 // pred_fallthru
      _
  $region6: #{linear_block.3} parent=0 // loop_footer
    %s13 = sadd.s32 1, %s9
  $region7: #{linear_block.3} parent=0 // loop_footer_branch
    %8 = sbr.rel target = $region3
  $region8: #{linear_block.3} parent=0 // loop_exit
    _

// kernel: linear_block.2
$region0: #{linear_block.2}
  #allocation0 [shape = 'u32[]', space=smem, size = 0x4, offset = 0x4, fixed_abs, tag = 'smem constant byte address 0x4 - core index']
  #allocation1 [shape = 'u32[144,128]{1,0:T(1,128)}', space=vmem, size = 0x12000, scoped, tag = 'internal scratch']
  %s0 = inlined_call_operand.vmem [shape: f32[2,4,256], index: 0, kind: input, shape index: {}]
  %s1 = inlined_call_operand.vmem [shape: f32[2,4,4], index: 1, kind: output, shape index: {0}]
  %s2 = inlined_call_operand.vmem [shape: f32[2,4,1], index: 2, kind: output, shape index: {1}]
  %3 = xla_tuple %s1, %s2
  %s4 = sld [smem:[#allocation0]]
  $region49: #{linear_block.2} parent=0
    _
  %s6 = ssub.s32 1, %s4
  %s7 = scalar_select 0, %s6, %s4
  loop: start=0, step=1, limit=4
  $region2: #{linear_block.2} parent=0 // loop_pre_header
    _
  $region3: #{linear_block.2} parent=0 // loop_header
    %s9 = sphi 0, %s13
    %p10 = scmp.ge.s32.totalorder %s9, 4
    %s16 = sphi 0, %s28
    %s17 = sphi 0, %s24
    %s18 = sphi 0, %s16
    %s19 = sphi 0, %s17
    %s20 = sphi 0, %s18
    %s21 = sphi 0, %s19
    %s33 = sphi 0, %s35
    %s36 = sphi 0, %s33
    %s37 = sphi 0, %s36
    %s53 = sphi 0, %s37
    %s59 = sphi 0, %s61
    %s62 = sphi 0, %s59
    %s63 = sphi 0, %s62
    %s79 = sphi 0, %s63
    %s85 = sphi 0, %s87
    %s88 = sphi 0, %s85
    %s89 = sphi 0, %s88
    %s105 = sphi 0, %s89
  $region4: #{linear_block.2} parent=0 // loop_header_branch
    %12 = sbr.rel (%p10) target = $region8
  $region5: #{linear_block.2} parent=0 // loop_body
    %s14 = ssub.s32 %s9, 1
    %s15 = ssub.s32 %s9, 2
    %s22 = sadd.s32 1, %s17
    %p23 = scmp.ge.s32.totalorder %s22, 1
    %s24 = scalar_select %p23, 0, %s22
    %s25 = sadd.s32 1, %s16
    %s26 = scalar_select %p23, %s25, %s16
    %p27 = scmp.ge.s32.totalorder %s26, 2
    %s28 = scalar_select %p27, 0, %s26
    %s29 = ssub.s32 %s16, %s28
    %s30 = ssub.s32 %s17, %s24
    %s31 = sor.u32 %s29, %s30
    %p32 = scmp.eq.s32.totalorder %s31, 0
    %s34 = sadd.s32 %s33, 1
    %s35 = scalar_select %p32, %s33, %s34
    %p38 = pneg %p32
    %p39 = scmp.eq.s32.totalorder %s9, 1
    %p40 = por %p38, %p39
    %p41 = scmp.ne.s32.totalorder %s33, %s36
    %p42 = scmp.eq.s32.totalorder %s9, 0
    %p43 = por %p41, %p42
    %p44 = scmp.ne.s32.totalorder %s33, %s36
    %p45 = scmp.eq.s32.totalorder %s14, 1
    %p46 = por %p44, %p45
    %p47 = scmp.ne.s32.totalorder %s36, %s37
    %p48 = scmp.eq.s32.totalorder %s14, 0
    %p49 = por %p47, %p48
    %p50 = scmp.ne.s32.totalorder %s36, %s37
    %p51 = scmp.eq.s32.totalorder %s15, 1
    %p52 = por %p50, %p51
    %p54 = scmp.ne.s32.totalorder %s37, %s53
    %p55 = scmp.eq.s32.totalorder %s15, 0
    %p56 = por %p54, %p55
    %s57 = ssub.s32 %s16, %s28
    %p58 = scmp.eq.s32.totalorder %s57, 0
    %s60 = sadd.s32 %s59, 1
    %s61 = scalar_select %p58, %s59, %s60
    %p64 = pneg %p58
    %p65 = scmp.eq.s32.totalorder %s9, 1
    %p66 = por %p64, %p65
    %p67 = scmp.ne.s32.totalorder %s59, %s62
    %p68 = scmp.eq.s32.totalorder %s9, 0
    %p69 = por %p67, %p68
    %p70 = scmp.ne.s32.totalorder %s59, %s62
    %p71 = scmp.eq.s32.totalorder %s14, 1
    %p72 = por %p70, %p71
    %p73 = scmp.ne.s32.totalorder %s62, %s63
    %p74 = scmp.eq.s32.totalorder %s14, 0
    %p75 = por %p73, %p74
    %p76 = scmp.ne.s32.totalorder %s62, %s63
    %p77 = scmp.eq.s32.totalorder %s15, 1
    %p78 = por %p76, %p77
    %p80 = scmp.ne.s32.totalorder %s63, %s79
    %p81 = scmp.eq.s32.totalorder %s15, 0
    %p82 = por %p80, %p81
    %s83 = ssub.s32 %s16, %s28
    %p84 = scmp.eq.s32.totalorder %s83, 0
    %s86 = sadd.s32 %s85, 1
    %s87 = scalar_select %p84, %s85, %s86
    %p90 = pneg %p84
    %p91 = scmp.eq.s32.totalorder %s9, 1
    %p92 = por %p90, %p91
    %p93 = scmp.ne.s32.totalorder %s85, %s88
    %p94 = scmp.eq.s32.totalorder %s9, 0
    %p95 = por %p93, %p94
    %p96 = scmp.ne.s32.totalorder %s85, %s88
    %p97 = scmp.eq.s32.totalorder %s14, 1
    %p98 = por %p96, %p97
    %p99 = scmp.ne.s32.totalorder %s88, %s89
    %p100 = scmp.eq.s32.totalorder %s14, 0
    %p101 = por %p99, %p100
    %p102 = scmp.ne.s32.totalorder %s88, %s89
    %p103 = scmp.eq.s32.totalorder %s15, 1
    %p104 = por %p102, %p103
    %p106 = scmp.ne.s32.totalorder %s89, %s105
    %p107 = scmp.eq.s32.totalorder %s15, 0
    %p108 = por %p106, %p107
    %p109 = scmp.le.s32.totalorder 1, %s9
    %p110 = scmp.lt.s32.totalorder %s9, 3
    %p111 = pnand %p109, %p110
    %p112 = pneg %p111
    // Predicated region
    $region9: #{linear_block.2} parent=5 // pred_check
      _
    $region10: #{linear_block.2} parent=5 // pred_check_branch
      %114 = sbr.rel (%p111) target = $region12
    $region11: #{linear_block.2} parent=5 // pred_region
      %s115 = ssub.s32 %s9, 1
    $region12: #{linear_block.2} parent=5 // pred_fallthru
      _
    %p116 = scmp.lt.s32.totalorder %s9, 2
    // Predicated region
    $region13: #{linear_block.2} parent=5 // pred_check
      %p117 = pneg %p116
    $region14: #{linear_block.2} parent=5 // pred_check_branch
      %119 = sbr.rel (%p117) target = $region16
    $region15: #{linear_block.2} parent=5 // pred_region
      // Predicated region
      $region17: #{linear_block.2} parent=15 // pred_check
        %p120 = pneg %p43
      $region18: #{linear_block.2} parent=15 // pred_check_branch
        %122 = sbr.rel (%p120) target = $region20
      $region19: #{linear_block.2} parent=15 // pred_region
        %s123 = smul.u32 2, %s17
        %p124 = scmp.lt.s32.totalorder %s16, 1
        %s125 = scalar_select %p124, %s16, 1
        %p126 = scmp.lt.s32.totalorder %s123, 1
        %s127 = scalar_select %p126, %s123, 1
        %s128 = smul.addr %s125, 2
        %s129 = sadd.s32 %s127, %s128
        %s130 = smul.addr %s129, 4
        %s131 = scalar_lea.vmem %s0, %s130
        %s132 = smul.u32 2, %s17
      $region20: #{linear_block.2} parent=15 // pred_fallthru
        _
    $region16: #{linear_block.2} parent=5 // pred_fallthru
      _
    %p133 = scmp.le.s32.totalorder 1, %s9
    %p134 = scmp.lt.s32.totalorder %s9, 3
    %p135 = pnand %p133, %p134
    %p136 = pneg %p135
    // Predicated region
    $region21: #{linear_block.2} parent=5 // pred_check
      _
    $region22: #{linear_block.2} parent=5 // pred_check_branch
      %138 = sbr.rel (%p135) target = $region24
    $region23: #{linear_block.2} parent=5 // pred_region
      %s139 = ssub.s32 %s9, 1
      %s140 = smul.u32 2, %s19
      %p141 = scmp.lt.s32.totalorder %s18, 1
      %s142 = scalar_select %p141, %s18, 1
      %p143 = scmp.lt.s32.totalorder %s140, 1
      %s144 = scalar_select %p143, %s140, 1
      %s145 = smul.addr %s142, 2
      %s146 = sadd.s32 %s144, %s145
      %s147 = smul.addr %s146, 4
      %s148 = scalar_lea.vmem %s0, %s147
      %p149 = pneg %p49
      %p150 = pneg %p46
      %p151 = pneg %p75
      %p152 = pneg %p72
      %p153 = scmp.lt.s32.totalorder %s18, 1
      %s154 = scalar_select %p153, %s18, 1
      %s155 = smul.addr %s154, 4
      %s156 = scalar_lea.vmem %s1, %s155
      %p157 = pneg %p101
      %p158 = pneg %p98
      %p159 = scmp.lt.s32.totalorder %s18, 1
      %s160 = scalar_select %p159, %s18, 1
      %s161 = smul.addr %s160, 4
      %s162 = scalar_lea.vmem %s2, %s161
      %s163 = smul.u32 2, %s19
      %p164 = scmp.lt.s32.totalorder %s18, 1
      %s165 = scalar_select %p164, %s18, 1
      %p166 = scmp.lt.s32.totalorder %s163, 1
      %s167 = scalar_select %p166, %s163, 1
      %s168 = smul.addr %s165, 2
      %s169 = sadd.s32 %s167, %s168
      %s170 = smul.addr %s169, 4
      %s171 = scalar_lea.vmem %s0, %s170
      %s172 = smul.u32 2, %s19
      %p173 = scmp.lt.s32.totalorder %s18, 1
      %s174 = scalar_select %p173, %s18, 1
      %s175 = smul.addr %s174, 4
      %s176 = scalar_lea.vmem %s1, %s175
      %p177 = scmp.lt.s32.totalorder %s18, 1
      %s178 = scalar_select %p177, %s18, 1
      %s179 = smul.addr %s178, 4
      %s180 = scalar_lea.vmem %s2, %s179
      %p181 = scmp.eq.s32.totalorder %s19, 0
      // Predicated region
      $region25: #{linear_block.2} parent=23 // pred_check
        %p182 = pneg %p181
      $region26: #{linear_block.2} parent=23 // pred_check_branch
        %184 = sbr.rel (%p182) target = $region28
      $region27: #{linear_block.2} parent=23 // pred_region
        %vm185 = vcmask 27648
        %186 = vst.msk [vmem:[%s176] sm:$0xf] %vm185, 0.0
        %vm187 = vcmask 3072
        %188 = vst.msk [vmem:[%s180] sm:$0xf] %vm187, 0.0
      $region28: #{linear_block.2} parent=23 // pred_fallthru
        _
      %v189 = vld [vmem:[%s171] sm:$0xff]
      %v190 = vld [vmem:[%s176] sm:$0xf]
      %v192 = vcombine.high %v189, %v189
      %194 = vmatprep.subr.mxu0 %v192
      %195 = vmatpush1.xpose.msra.mxu0 %v189
      %196 = vmatprep.subr.mxu0 0.0
      %197 = vmatpush1.xpose.msra.mxu0 0.0
      %198 = vmatprep.subr.mxu0 0.0
      %199 = vmatpush1.xpose.msra.mxu0 0.0
      %200 = vmatprep.subr.mxu0 0.0
      %201 = vmatpush1.xpose.msra.mxu0 0.0
      %202 = vmatprep.subr.mxu0 0.0
      %203 = vmatpush1.xpose.msra.mxu0 0.0
      %204 = vmatprep.subr.mxu0 0.0
      %205 = vmatpush1.xpose.msra.mxu0 0.0
      %206 = vmatprep.subr.mxu0 0.0
      %207 = vmatpush1.xpose.msra.mxu0 0.0
      %208 = vmatprep.subr.mxu0 0.0
      %209 = vmatpush1.xpose.msra.mxu0 0.0
      %210 = vmatprep.subr.mxu0 0.0
      %211 = vmatpush1.xpose.msra.mxu0 0.0
      %212 = vmatprep.subr.mxu0 0.0
      %213 = vmatpush1.xpose.msra.mxu0 0.0
      %214 = vmatprep.subr.mxu0 0.0
      %215 = vmatpush1.xpose.msra.mxu0 0.0
      %216 = vmatprep.subr.mxu0 0.0
      %217 = vmatpush1.xpose.msra.mxu0 0.0
      %218 = vmatprep.subr.mxu0 0.0
      %219 = vmatpush1.xpose.msra.mxu0 0.0
      %220 = vmatprep.subr.mxu0 0.0
      %221 = vmatpush1.xpose.msra.mxu0 0.0
      %222 = vmatprep.subr.mxu0 0.0
      %223 = vmatpush1.xpose.msra.mxu0 0.0
      %224 = vmatprep.subr.mxu0 0.0
      %225 = vmatpush1.xpose.msra.mxu0 0.0
      %226 = vmatprep.subr.mxu0 0.0
      %227 = vmatpush1.xpose.msra.mxu0 0.0
      %228 = vmatprep.subr.mxu0 0.0
      %229 = vmatpush1.xpose.msra.mxu0 0.0
      %230 = vmatprep.subr.mxu0 0.0
      %231 = vmatpush1.xpose.msra.mxu0 0.0
      %232 = vmatprep.subr.mxu0 0.0
      %233 = vmatpush1.xpose.msra.mxu0 0.0
      %234 = vmatprep.subr.mxu0 0.0
      %235 = vmatpush1.xpose.msra.mxu0 0.0
      %236 = vmatprep.subr.mxu0 0.0
      %237 = vmatpush1.xpose.msra.mxu0 0.0
      %238 = vmatprep.subr.mxu0 0.0
      %239 = vmatpush1.xpose.msra.mxu0 0.0
      %240 = vmatprep.subr.mxu0 0.0
      %241 = vmatpush1.xpose.msra.mxu0 0.0
      %242 = vmatprep.subr.mxu0 0.0
      %243 = vmatpush1.xpose.msra.mxu0 0.0
      %244 = vmatprep.subr.mxu0 0.0
      %245 = vmatpush1.xpose.msra.mxu0 0.0
      %246 = vmatprep.subr.mxu0 0.0
      %247 = vmatpush1.xpose.msra.mxu0 0.0
      %248 = vmatprep.subr.mxu0 0.0
      %249 = vmatpush1.xpose.msra.mxu0 0.0
      %250 = vmatprep.subr.mxu0 0.0
      %251 = vmatpush1.xpose.msra.mxu0 0.0
      %252 = vmatprep.subr.mxu0 0.0
      %253 = vmatpush1.xpose.msra.mxu0 0.0
      %254 = vmatprep.subr.mxu0 0.0
      %255 = vmatpush1.xpose.msra.mxu0 0.0
      %256 = vmatprep.subr.mxu0 0.0
      %257 = vmatpush1.xpose.msra.mxu0 0.0
      %258 = vmatprep.mubr.f32.mxu0 %v192
      %259 = vmatmul.mubr.f32.gmra.mrb[0].mxu0 %v189
      %v260 = vpop.f32.mrb[0].mxu0
      %v261 = vadd.f32 0.0, %v260
      %v262 = vpop.f32.mrb[0].mxu0
      %263 = vdwg.mxu0
      %v264 = vadd.f32 %v190, %v261
      %vm265 = vcmask 27648
      %266 = vst.msk [vmem:[%s176] sm:$0xf] %vm265, %v264
      %v267 = vld [vmem:[%s180] sm:$0xf]
      %vm268 = vcmask 1043456
      %v269 = vsel %vm268, %v189, 0.0
      %v270 = vsel %vm268, %v192, 0.0
      %v271 = vadd.f32 %v269, %v270
      %272 = vadd.xlane.f32.xlu0 %v271
      %v273 = vpop.xlane.xlu0 %272
      %v274 = vadd.f32 %v267, %v273
      %vm275 = vcmask 3072
      %276 = vst.msk [vmem:[%s180] sm:$0xf] %vm275, %v274
      %p277 = scmp.lt.s32.totalorder %s18, 1
      %s278 = scalar_select %p277, %s18, 1
      %s279 = smul.addr %s278, 4
      %s280 = scalar_lea.vmem %s1, %s279
      %p281 = scmp.lt.s32.totalorder %s18, 1
      %s282 = scalar_select %p281, %s18, 1
      %s283 = smul.addr %s282, 4
      %s284 = scalar_lea.vmem %s2, %s283
      // Predicated region
      $region29: #{linear_block.2} parent=23 // pred_check
        %p285 = pneg %p72
      $region30: #{linear_block.2} parent=23 // pred_check_branch
        %287 = sbr.rel (%p285) target = $region32
      $region31: #{linear_block.2} parent=23 // pred_region
        _
      $region32: #{linear_block.2} parent=23 // pred_fallthru
        _
      // Predicated region
      $region33: #{linear_block.2} parent=23 // pred_check
        %p288 = pneg %p98
      $region34: #{linear_block.2} parent=23 // pred_check_branch
        %290 = sbr.rel (%p288) target = $region36
      $region35: #{linear_block.2} parent=23 // pred_region
        _
      $region36: #{linear_block.2} parent=23 // pred_fallthru
        _
    $region24: #{linear_block.2} parent=5 // pred_fallthru
      _
    %p291 = scmp.le.s32.totalorder 2, %s9
    // Predicated region
    $region37: #{linear_block.2} parent=5 // pred_check
      %p292 = pneg %p291
    $region38: #{linear_block.2} parent=5 // pred_check_branch
      %294 = sbr.rel (%p292) target = $region40
    $region39: #{linear_block.2} parent=5 // pred_region
      %s295 = ssub.s32 %s9, 2
      // Predicated region
      $region41: #{linear_block.2} parent=39 // pred_check
        %p296 = pneg %p78
      $region42: #{linear_block.2} parent=39 // pred_check_branch
        %298 = sbr.rel (%p296) target = $region44
      $region43: #{linear_block.2} parent=39 // pred_region
        %p299 = scmp.lt.s32.totalorder %s20, 1
        %s300 = scalar_select %p299, %s20, 1
        %s301 = smul.addr %s300, 4
        %s302 = scalar_lea.vmem %s1, %s301
      $region44: #{linear_block.2} parent=39 // pred_fallthru
        _
      // Predicated region
      $region45: #{linear_block.2} parent=39 // pred_check
        %p303 = pneg %p104
      $region46: #{linear_block.2} parent=39 // pred_check_branch
        %305 = sbr.rel (%p303) target = $region48
      $region47: #{linear_block.2} parent=39 // pred_region
        %p306 = scmp.lt.s32.totalorder %s20, 1
        %s307 = scalar_select %p306, %s20, 1
        %s308 = smul.addr %s307, 4
        %s309 = scalar_lea.vmem %s2, %s308
      $region48: #{linear_block.2} parent=39 // pred_fallthru
        _
    $region40: #{linear_block.2} parent=5 // pred_fallthru
      _
  $region6: #{linear_block.2} parent=0 // loop_footer
    %s13 = sadd.s32 1, %s9
  $region7: #{linear_block.2} parent=0 // loop_footer_branch
    %8 = sbr.rel target = $region3
  $region8: #{linear_block.2} parent=0 // loop_exit
    _

</llo_original>
